<compile_context>
chip_gen: v7x
topology: tpu7x:2x2x1
jax: 0.10.0
libtpu: 0.0.40
codegen_flags: <defaults>
</compile_context>

<pallas_src>
import numpy as np
import jax
import jax.numpy as jnp
from jax.experimental import pallas as pl
from jax.experimental.pallas import tpu as pltpu


def _round_up(v, m):
    return (v + m - 1) // m * m


def rgcn_kernel(xg_ref, w_ref, src_ref, z_ref, acc_ref):
    # grid: (node tile i [parallel], relation r [reduction], edge chunk ec [reduction])
    i = pl.program_id(0)
    r = pl.program_id(1)
    ec = pl.program_id(2)

    @pl.when((r == 0) & (ec == 0))
    def _():
        acc_ref[...] = jnp.zeros_like(acc_ref)

    # h[e, :] = relu(x[dst[e]] @ W_r)  -- bf16 MXU matmul, f32 result.
    h = jnp.maximum(
        jnp.dot(xg_ref[...], w_ref[...], preferred_element_type=jnp.float32),
        0.0,
    )

    # One-hot scatter block built in-kernel (no dense (N, E) HBM stream):
    #   onehot[n, e] = 1  iff  src[e] == global node index of output row n
    # Padded edges carry src == N_pad, which never matches, so they contribute 0
    # (relu-before-mask is safe because the mask is exactly {0, 1}).
    tm = acc_ref.shape[0]
    te = src_ref.shape[-1]
    node_ids = jax.lax.broadcasted_iota(jnp.int32, (tm, te), 0) + i * tm
    onehot = (node_ids == src_ref[...]).astype(jnp.bfloat16)

    # z[n, :] += sum_e onehot[n, e] * h[e, :]  -- bf16 MXU, f32 accumulator.
    acc_ref[...] += jnp.dot(onehot, h.astype(jnp.bfloat16),
                            preferred_element_type=jnp.float32)

    @pl.when((r == pl.num_programs(1) - 1) & (ec == pl.num_programs(2) - 1))
    def _():
        z_ref[...] = acc_ref[...]


def rgcn_layer(x, edge_index, edge_type, weights, *, tm=256, te=512):
    """x: [N, D_in] f32, edge_index: [2, E] i32 (row0 = write idx, row1 = neighbor),
    edge_type: [E] i32, weights: [R, D_in, D_out] f32  ->  z: [N, D_out] f32."""
    x = jnp.asarray(x, jnp.float32)
    weights = jnp.asarray(weights, jnp.float32)
    N, d_in = x.shape
    R, _, d_out = weights.shape

    # ---- static tiling choices ----------------------------------------------
    if N <= tm:
        tm = _round_up(max(N, 8), 8)
        N_pad = tm
    else:
        N_pad = _round_up(N, tm)
    n_tiles = N_pad // tm
    d_out_pad = _round_up(d_out, 128)        # lane-dense output (avoids masked vst)

    # ---- host-side edge bucketing by (relation, destination node tile) -------
    ei_np = np.asarray(edge_index).astype(np.int32)
    src_np, dst_np = ei_np[0], ei_np[1]
    et_np = np.asarray(edge_type).astype(np.int32)
    E = int(src_np.shape[0])
    tile_np = src_np // tm

    counts = np.zeros((R, n_tiles), np.int64)
    if E:
        np.add.at(counts, (et_np, tile_np), 1)
    e_max = max(int(counts.max()), 1)

    te = _round_up(te, 128)                  # chunked edge blocks stay lane aligned
    if e_max <= te:
        te = _round_up(e_max, 16)            # bf16 sublane multiple; single full block
        E_pad = te
    else:
        E_pad = _round_up(e_max, te)
    n_ec = E_pad // te

    # Padding sentinels: src = N_pad never matches any output row; dst = N
    # gathers an appended all-zero feature row.
    src_b = np.full((R, n_tiles, 1, E_pad), N_pad, dtype=np.int32)
    dst_b = np.full((R, n_tiles, E_pad), N, dtype=np.int32)
    if E:
        order = np.lexsort((tile_np, et_np))          # sort by (relation, tile)
        r_s, t_s = et_np[order], tile_np[order]
        starts = np.zeros(R * n_tiles, np.int64)
        starts[1:] = np.cumsum(counts.reshape(-1))[:-1]
        rank = np.arange(E) - starts[r_s * n_tiles + t_s]
        src_b[r_s, t_s, 0, rank] = src_np[order]
        dst_b[r_s, t_s, rank] = dst_np[order]

    # ---- gather neighbor features + bf16 cast (plain JAX glue) ---------------
    x_ext = jnp.concatenate([x, jnp.zeros((1, d_in), jnp.float32)], 0).astype(jnp.bfloat16)
    xg = x_ext[jnp.asarray(dst_b)]                    # (R, n_tiles, E_pad, d_in) bf16

    w_pad = jnp.zeros((R, d_in, d_out_pad), jnp.float32)
    w_pad = w_pad.at[:, :, :d_out].set(weights).astype(jnp.bfloat16)

    grid = (n_tiles, R, n_ec)

    z_pad = pl.pallas_call(
        rgcn_kernel,
        out_shape=jax.ShapeDtypeStruct((N_pad, d_out_pad), jnp.float32),
        grid_spec=pltpu.PrefetchScalarGridSpec(
            num_scalar_prefetch=0,
            grid=grid,
            in_specs=[
                # gathered neighbor features for (relation r, node tile i, chunk ec)
                pl.BlockSpec((pl.Squeezed(), pl.Squeezed(), te, d_in),
                             lambda i, r, ec: (r, i, ec, 0)),
                # W_r (padded to lane-dense d_out)
                pl.BlockSpec((pl.Squeezed(), d_in, d_out_pad),
                             lambda i, r, ec: (r, 0, 0)),
                # int32 src (write) indices for (relation r, node tile i, chunk ec)
                pl.BlockSpec((pl.Squeezed(), pl.Squeezed(), 1, te),
                             lambda i, r, ec: (r, i, 0, ec)),
            ],
            out_specs=pl.BlockSpec((tm, d_out_pad), lambda i, r, ec: (i, 0)),
            scratch_shapes=[pltpu.VMEM((tm, d_out_pad), jnp.float32)],
        ),
        compiler_params=pltpu.CompilerParams(
            dimension_semantics=("parallel", "arbitrary", "arbitrary"),
            vmem_limit_bytes=48 * 1024 * 1024,
        ),
    )(xg, w_pad, jnp.asarray(src_b))

    return z_pad[:N, :d_out]


if __name__ == "__main__":
    N, D_IN, D_OUT, R, E = 16, 32, 32, 3, 24

    key = jax.random.PRNGKey(0)
    k_x, k_w, k_dst = jax.random.split(key, 3)

    x = jax.random.normal(k_x, (N, D_IN), dtype=jnp.float32)

    # nn.init.xavier_uniform_ equivalent: U(-b, b), b = sqrt(6 / (fan_in + fan_out))
    bound = float(np.sqrt(6.0 / (D_IN + D_OUT)))
    weights = jax.random.uniform(k_w, (R, D_IN, D_OUT), jnp.float32, -bound, bound)

    # Deterministic edges; (src, relation) pairs are unique (lcm(N, R) > E), so
    # the scatter-add matches PyTorch's indexed-add exactly.
    src = jnp.arange(E, dtype=jnp.int32) % N
    dst = jax.random.randint(k_dst, (E,), 0, N, dtype=jnp.int32)
    edge_type = jnp.arange(E, dtype=jnp.int32) % R
    edge_index = jnp.stack([src, dst])

    z = jax.block_until_ready(rgcn_layer(x, edge_index, edge_type, weights))

    # Pure-numpy reference replicating the PyTorch loop.  The kernel feeds bf16
    # operands to the MXU (f32 accumulation), so the reference uses the same
    # bf16-rounded x / W; remaining error is the bf16 rounding of h before the
    # one-hot scatter matmul (<= 0.4% relative, since h >= 0).
    x_bf = np.asarray(x.astype(jnp.bfloat16).astype(jnp.float32))
    w_bf = np.asarray(weights.astype(jnp.bfloat16).astype(jnp.float32))
    src_np = np.asarray(src)
    dst_np = np.asarray(dst)
    et_np = np.asarray(edge_type)
    z_ref = np.zeros((N, D_OUT), np.float32)
    for rel in range(R):
        sel = et_np == rel
        h = np.maximum(x_bf[dst_np[sel]] @ w_bf[rel], 0.0)
        np.add.at(z_ref, src_np[sel], h)

    assert z.shape == (N, D_OUT)
    assert np.allclose(np.asarray(z), z_ref, atol=1e-3, rtol=1e-2), "mismatch vs reference"
    print("KERNEL_OK")
</pallas_src>

<mosaic_0001>
module attributes {stable_mosaic.version = 11 : i64} {
  func.func @rgcn_kernel(%arg0: i32, %arg1: i32, %arg2: i32, %arg3: memref<1x1x16x32xbf16, #tpu.memory_space<vmem>>, %arg4: memref<1x32x128xbf16, #tpu.memory_space<vmem>>, %arg5: memref<1x1x1x16xi32, #tpu.memory_space<vmem>>, %arg6: memref<16x128xf32, #tpu.memory_space<vmem>>, %arg7: memref<16x128xf32, #tpu.memory_space<vmem>>) attributes {dimension_semantics = [#tpu.dimension_semantics<parallel>, #tpu.dimension_semantics<arbitrary>, #tpu.dimension_semantics<arbitrary>], iteration_bounds = array<i64: 1, 3, 1>, scalar_prefetch = 0 : i64, scratch_operands = 1 : i64, tpu.core_type = #tpu.core_type<tc>, window_params = [{transform_indices = @transform_0, window_bounds = array<i64: 1, 1, 16, 32>}, {transform_indices = @transform_1, window_bounds = array<i64: 1, 32, 128>}, {transform_indices = @transform_2, window_bounds = array<i64: 1, 1, 1, 16>}, {transform_indices = @transform_3, window_bounds = array<i64: 16, 128>}]} {
    %c0_i32 = arith.constant 0 : i32
    %0 = arith.cmpi eq, %arg1, %c0_i32 : i32
    %c0_i32_0 = arith.constant 0 : i32
    %1 = arith.cmpi eq, %arg2, %c0_i32_0 : i32
    %2 = arith.andi %0, %1 : i1
    %3 = arith.extui %2 : i1 to i32
    %c0_i32_1 = arith.constant 0 : i32
    %4 = arith.cmpi ne, %3, %c0_i32_1 : i32
    scf.if %4 {
      %cst_20 = arith.constant 0.000000e+00 : f32
      %33 = vector.broadcast %cst_20 : f32 to vector<16x128xf32>
      %c0_21 = arith.constant 0 : index
      %c0_22 = arith.constant 0 : index
      %34 = vector.load %arg7[%c0_21, %c0_22] : memref<16x128xf32, #tpu.memory_space<vmem>>, vector<16x128xf32>
      tpu.vector_store %arg7[%c0_21, %c0_22], %33 {strides = array<i32>} : memref<16x128xf32, #tpu.memory_space<vmem>>, vector<16x128xf32>,
    } else {
    }
    %c0 = arith.constant 0 : index
    %c0_2 = arith.constant 0 : index
    %c0_3 = arith.constant 0 : index
    %c0_4 = arith.constant 0 : index
    %5 = vector.load %arg3[%c0, %c0_2, %c0_3, %c0_4] : memref<1x1x16x32xbf16, #tpu.memory_space<vmem>>, vector<1x1x16x32xbf16>
    %6 = vector.shape_cast %5 : vector<1x1x16x32xbf16> to vector<16x32xbf16>
    %c0_5 = arith.constant 0 : index
    %c0_6 = arith.constant 0 : index
    %c0_7 = arith.constant 0 : index
    %7 = vector.load %arg4[%c0_5, %c0_6, %c0_7] : memref<1x32x128xbf16, #tpu.memory_space<vmem>>, vector<1x32x128xbf16>
    %8 = vector.shape_cast %7 : vector<1x32x128xbf16> to vector<32x128xbf16>
    %cst = arith.constant dense<0.000000e+00> : vector<16x128xf32>
    %9 = tpu.matmul %6, %8, %cst {dimension_numbers = #tpu.dot_dimension_numbers<[1], [0], [0], [1], [0, 0, 1, 1], [], []>} : vector<16x32xbf16>, vector<32x128xbf16>, vector<16x128xf32> -> vector<16x128xf32>
    %cst_8 = arith.constant 0.000000e+00 : f32
    %10 = vector.broadcast %cst_8 : f32 to vector<16x128xf32>
    %11 = arith.maximumf %9, %10 : vector<16x128xf32>
    %12 = tpu.iota {dimensions = array<i32: 0>} : vector<16x16xi32>
    %c16_i32 = arith.constant 16 : i32
    %13 = arith.muli %arg0, %c16_i32 : i32
    %14 = vector.broadcast %13 : i32 to vector<16x16xi32>
    %15 = arith.addi %12, %14 : vector<16x16xi32>
    %c0_9 = arith.constant 0 : index
    %c0_10 = arith.constant 0 : index
    %c0_11 = arith.constant 0 : index
    %c0_12 = arith.constant 0 : index
    %16 = vector.load %arg5[%c0_9, %c0_10, %c0_11, %c0_12] : memref<1x1x1x16xi32, #tpu.memory_space<vmem>>, vector<1x1x1x16xi32>
    %17 = vector.shape_cast %16 : vector<1x1x1x16xi32> to vector<1x16xi32>
    %18 = vector.broadcast %17 : vector<1x16xi32> to vector<16x16xi32>
    %19 = arith.cmpi eq, %15, %18 : vector<16x16xi32>
    %20 = arith.extui %19 : vector<16x16xi1> to vector<16x16xi32>
    %21 = arith.sitofp %20 : vector<16x16xi32> to vector<16x16xf32>
    %22 = arith.truncf %21 : vector<16x16xf32> to vector<16x16xbf16>
    %c0_13 = arith.constant 0 : index
    %c0_14 = arith.constant 0 : index
    %23 = vector.load %arg7[%c0_13, %c0_14] : memref<16x128xf32, #tpu.memory_space<vmem>>, vector<16x128xf32>
    %24 = arith.truncf %11 : vector<16x128xf32> to vector<16x128xbf16>
    %cst_15 = arith.constant dense<0.000000e+00> : vector<16x128xf32>
    %25 = tpu.matmul %22, %24, %cst_15 {dimension_numbers = #tpu.dot_dimension_numbers<[1], [0], [0], [1], [0, 0, 1, 1], [], []>} : vector<16x16xbf16>, vector<16x128xbf16>, vector<16x128xf32> -> vector<16x128xf32>
    %26 = arith.addf %23, %25 : vector<16x128xf32>
    %c0_16 = arith.constant 0 : index
    %c0_17 = arith.constant 0 : index
    %27 = vector.load %arg7[%c0_16, %c0_17] : memref<16x128xf32, #tpu.memory_space<vmem>>, vector<16x128xf32>
    tpu.vector_store %arg7[%c0_16, %c0_17], %26 {strides = array<i32>} : memref<16x128xf32, #tpu.memory_space<vmem>>, vector<16x128xf32>,
    %c2_i32 = arith.constant 2 : i32
    %28 = arith.cmpi eq, %arg1, %c2_i32 : i32
    %c0_i32_18 = arith.constant 0 : i32
    %29 = arith.cmpi eq, %arg2, %c0_i32_18 : i32
    %30 = arith.andi %28, %29 : i1
    %31 = arith.extui %30 : i1 to i32
    %c0_i32_19 = arith.constant 0 : i32
    %32 = arith.cmpi ne, %31, %c0_i32_19 : i32
    scf.if %32 {
      %c0_20 = arith.constant 0 : index
      %c0_21 = arith.constant 0 : index
      %33 = vector.load %arg7[%c0_20, %c0_21] : memref<16x128xf32, #tpu.memory_space<vmem>>, vector<16x128xf32>
      %c0_22 = arith.constant 0 : index
      %c0_23 = arith.constant 0 : index
      %34 = vector.load %arg6[%c0_22, %c0_23] : memref<16x128xf32, #tpu.memory_space<vmem>>, vector<16x128xf32>
      tpu.vector_store %arg6[%c0_22, %c0_23], %33 {strides = array<i32>} : memref<16x128xf32, #tpu.memory_space<vmem>>, vector<16x128xf32>,
    } else {
    }
    return
  }
  func.func @transform_0(%arg0: i32, %arg1: i32, %arg2: i32) -> (i32, i32, i32, i32) {
    %c0_i32 = arith.constant 0 : i32
    %c0_i32_0 = arith.constant 0 : i32
    return %arg1, %arg0, %arg2, %c0_i32 : i32, i32, i32, i32
  }
  func.func @transform_1(%arg0: i32, %arg1: i32, %arg2: i32) -> (i32, i32, i32) {
    %c0_i32 = arith.constant 0 : i32
    %c0_i32_0 = arith.constant 0 : i32
    %c0_i32_1 = arith.constant 0 : i32
    return %arg1, %c0_i32, %c0_i32_0 : i32, i32, i32
  }
  func.func @transform_2(%arg0: i32, %arg1: i32, %arg2: i32) -> (i32, i32, i32, i32) {
    %c0_i32 = arith.constant 0 : i32
    %c0_i32_0 = arith.constant 0 : i32
    return %arg1, %arg0, %c0_i32, %arg2 : i32, i32, i32, i32
  }
  func.func @transform_3(%arg0: i32, %arg1: i32, %arg2: i32) -> (i32, i32) {
    %c0_i32 = arith.constant 0 : i32
    %c0_i32_0 = arith.constant 0 : i32
    return %arg0, %c0_i32 : i32, i32
  }
}

</mosaic_0001>

<llo_original>
// kernel: tpu_custom_call.1
$region0: #{tpu_custom_call.1}
  #allocation0 [shape = 'u32[]', space=smem, size = 0x4, offset = 0x4, fixed_abs, tag = 'smem constant byte address 0x4 - core index']
  #allocation1 [shape = 'u32[144,128]{1,0:T(1,128)}', space=vmem, size = 0x12000, scoped, tag = 'internal scratch']
  #allocation2 [shape = 'f32[16,128]{1,0:T(8,128)}', space=vmem, size = 0x2000, scoped, tag = 'scratch operand']
  %s0 = inlined_call_operand.hbm [shape: bf16[3,1,16,32], index: 0, kind: input, shape index: {}]
  %s1 = inlined_call_operand.hbm [shape: bf16[3,32,128], index: 1, kind: input, shape index: {}]
  %s2 = inlined_call_operand.vmem [shape: s32[3,1,1,16], index: 2, kind: input, shape index: {}]
  %s3 = inlined_call_operand.hbm [shape: f32[16,128], index: 3, kind: output, shape index: {}]
  %s4 = sld [smem:[#allocation0]]
  $region61: #{tpu_custom_call.1} parent=0
    _
  %s6 = ssub.s32 1, %s4
  %s7 = scalar_select 0, %s6, %s4
  $region1: #{tpu_custom_call.1} parent=0
    #allocation3 [shape = 'u8[8192]{0}', space=vmem, size = 0x2000, scoped, tag = 'input window, operand 0']
    #allocation4 [shape = 's32[2]{0}', space=sflag, size = 0x8, scoped, tag = 'scoped memory for tpu_custom_call.1']
    #allocation5 [shape = 's32[2]{0}', space=sflag, size = 0x8, scoped, tag = 'scoped memory for tpu_custom_call.1']
    #allocation6 [shape = 'u8[16384]{0}', space=vmem, size = 0x4000, scoped, tag = 'input window, operand 1']
    #allocation7 [shape = 's32[2]{0}', space=sflag, size = 0x8, scoped, tag = 'scoped memory for tpu_custom_call.1']
    #allocation8 [shape = 'u8[8192]{0}', space=vmem, size = 0x2000, scoped, tag = 'output window, operand 0, single buffered']
    %8 = vsyncpa [#allocation4], 0
    %s9 = scalar_lea.sflag [#allocation4], 1
    %10 = vsyncpa %s9, 0
    %11 = vsyncpa [#allocation7], 0
    %s12 = scalar_lea.sflag [#allocation7], 1
    %13 = vsyncpa %s12, 0
    %14 = vsyncpa [#allocation5], 0
    loop: start=0, step=1, limit=5
    $region2: #{tpu_custom_call.1} parent=1 // loop_pre_header
      _
    $region3: #{tpu_custom_call.1} parent=1 // loop_header
      %s16 = sphi 0, %s20
      %p17 = scmp.ge.s32.totalorder %s16, 5
      %s23 = sphi 0, %s42
      %s24 = sphi 0, %s38
      %s25 = sphi 0, %s34
      %s26 = sphi 0, %s23
      %s27 = sphi 0, %s24
      %s28 = sphi 0, %s25
      %s29 = sphi 0, %s26
      %s30 = sphi 0, %s27
      %s31 = sphi 0, %s28
      %s49 = sphi 0, %s51
      %s52 = sphi 0, %s49
      %s53 = sphi 0, %s52
      %s69 = sphi 0, %s53
      %s75 = sphi 0, %s77
      %s78 = sphi 0, %s75
      %s79 = sphi 0, %s78
      %s95 = sphi 0, %s79
      %s105 = sphi 0, %s107
      %s108 = sphi 0, %s105
      %s109 = sphi 0, %s108
      %s125 = sphi 0, %s109
      %s131 = sphi 0, %s133
      %s134 = sphi 0, %s131
      %s135 = sphi 0, %s134
      %s151 = sphi 0, %s135
    $region4: #{tpu_custom_call.1} parent=1 // loop_header_branch
      %19 = sbr.rel (%p17) target = $region8
    $region5: #{tpu_custom_call.1} parent=1 // loop_body
      %s21 = ssub.s32 %s16, 1
      %s22 = ssub.s32 %s16, 2
      %s32 = sadd.s32 1, %s25
      %p33 = scmp.ge.s32.totalorder %s32, 1
      %s34 = scalar_select %p33, 0, %s32
      %s35 = sadd.s32 1, %s24
      %s36 = scalar_select %p33, %s35, %s24
      %p37 = scmp.ge.s32.totalorder %s36, 3
      %s38 = scalar_select %p37, 0, %s36
      %s39 = sadd.s32 1, %s23
      %s40 = scalar_select %p37, %s39, %s23
      %p41 = scmp.ge.s32.totalorder %s40, 1
      %s42 = scalar_select %p41, 0, %s40
      %s43 = ssub.s32 %s24, %s38
      %s44 = ssub.s32 %s23, %s42
      %s45 = sor.u32 %s43, %s44
      %s46 = ssub.s32 %s25, %s34
      %s47 = sor.u32 %s45, %s46
      %p48 = scmp.eq.s32.totalorder %s47, 0
      %s50 = sadd.s32 %s49, 1
      %s51 = scalar_select %p48, %s49, %s50
      %p54 = pneg %p48
      %p55 = scmp.eq.s32.totalorder %s16, 2
      %p56 = por %p54, %p55
      %p57 = scmp.ne.s32.totalorder %s49, %s52
      %p58 = scmp.eq.s32.totalorder %s16, 0
      %p59 = por %p57, %p58
      %p60 = scmp.ne.s32.totalorder %s49, %s52
      %p61 = scmp.eq.s32.totalorder %s21, 2
      %p62 = por %p60, %p61
      %p63 = scmp.ne.s32.totalorder %s52, %s53
      %p64 = scmp.eq.s32.totalorder %s21, 0
      %p65 = por %p63, %p64
      %p66 = scmp.ne.s32.totalorder %s52, %s53
      %p67 = scmp.eq.s32.totalorder %s22, 2
      %p68 = por %p66, %p67
      %p70 = scmp.ne.s32.totalorder %s53, %s69
      %p71 = scmp.eq.s32.totalorder %s22, 0
      %p72 = por %p70, %p71
      %s73 = ssub.s32 %s24, %s38
      %p74 = scmp.eq.s32.totalorder %s73, 0
      %s76 = sadd.s32 %s75, 1
      %s77 = scalar_select %p74, %s75, %s76
      %p80 = pneg %p74
      %p81 = scmp.eq.s32.totalorder %s16, 2
      %p82 = por %p80, %p81
      %p83 = scmp.ne.s32.totalorder %s75, %s78
      %p84 = scmp.eq.s32.totalorder %s16, 0
      %p85 = por %p83, %p84
      %p86 = scmp.ne.s32.totalorder %s75, %s78
      %p87 = scmp.eq.s32.totalorder %s21, 2
      %p88 = por %p86, %p87
      %p89 = scmp.ne.s32.totalorder %s78, %s79
      %p90 = scmp.eq.s32.totalorder %s21, 0
      %p91 = por %p89, %p90
      %p92 = scmp.ne.s32.totalorder %s78, %s79
      %p93 = scmp.eq.s32.totalorder %s22, 2
      %p94 = por %p92, %p93
      %p96 = scmp.ne.s32.totalorder %s79, %s95
      %p97 = scmp.eq.s32.totalorder %s22, 0
      %p98 = por %p96, %p97
      %s99 = ssub.s32 %s24, %s38
      %s100 = ssub.s32 %s23, %s42
      %s101 = sor.u32 %s99, %s100
      %s102 = ssub.s32 %s25, %s34
      %s103 = sor.u32 %s101, %s102
      %p104 = scmp.eq.s32.totalorder %s103, 0
      %s106 = sadd.s32 %s105, 1
      %s107 = scalar_select %p104, %s105, %s106
      %p110 = pneg %p104
      %p111 = scmp.eq.s32.totalorder %s16, 2
      %p112 = por %p110, %p111
      %p113 = scmp.ne.s32.totalorder %s105, %s108
      %p114 = scmp.eq.s32.totalorder %s16, 0
      %p115 = por %p113, %p114
      %p116 = scmp.ne.s32.totalorder %s105, %s108
      %p117 = scmp.eq.s32.totalorder %s21, 2
      %p118 = por %p116, %p117
      %p119 = scmp.ne.s32.totalorder %s108, %s109
      %p120 = scmp.eq.s32.totalorder %s21, 0
      %p121 = por %p119, %p120
      %p122 = scmp.ne.s32.totalorder %s108, %s109
      %p123 = scmp.eq.s32.totalorder %s22, 2
      %p124 = por %p122, %p123
      %p126 = scmp.ne.s32.totalorder %s109, %s125
      %p127 = scmp.eq.s32.totalorder %s22, 0
      %p128 = por %p126, %p127
      %s129 = ssub.s32 %s23, %s42
      %p130 = scmp.eq.s32.totalorder %s129, 0
      %s132 = sadd.s32 %s131, 1
      %s133 = scalar_select %p130, %s131, %s132
      %p136 = pneg %p130
      %p137 = scmp.eq.s32.totalorder %s16, 2
      %p138 = por %p136, %p137
      %p139 = scmp.ne.s32.totalorder %s131, %s134
      %p140 = scmp.eq.s32.totalorder %s16, 0
      %p141 = por %p139, %p140
      %p142 = scmp.ne.s32.totalorder %s131, %s134
      %p143 = scmp.eq.s32.totalorder %s21, 2
      %p144 = por %p142, %p143
      %p145 = scmp.ne.s32.totalorder %s134, %s135
      %p146 = scmp.eq.s32.totalorder %s21, 0
      %p147 = por %p145, %p146
      %p148 = scmp.ne.s32.totalorder %s134, %s135
      %p149 = scmp.eq.s32.totalorder %s22, 2
      %p150 = por %p148, %p149
      %p152 = scmp.ne.s32.totalorder %s135, %s151
      %p153 = scmp.eq.s32.totalorder %s22, 0
      %p154 = por %p152, %p153
      %p155 = scmp.le.s32.totalorder 1, %s16
      %p156 = scmp.lt.s32.totalorder %s16, 4
      %p157 = pnand %p155, %p156
      %p158 = pneg %p157
      // Predicated region
      $region9: #{tpu_custom_call.1} parent=5 // pred_check
        _
      $region10: #{tpu_custom_call.1} parent=5 // pred_check_branch
        %160 = sbr.rel (%p157) target = $region12
      $region11: #{tpu_custom_call.1} parent=5 // pred_region
        %s161 = ssub.s32 %s16, 1
      $region12: #{tpu_custom_call.1} parent=5 // pred_fallthru
        _
      %p162 = scmp.lt.s32.totalorder %s16, 3
      // Predicated region
      $region13: #{tpu_custom_call.1} parent=5 // pred_check
        %p163 = pneg %p162
      $region14: #{tpu_custom_call.1} parent=5 // pred_check_branch
        %165 = sbr.rel (%p163) target = $region16
      $region15: #{tpu_custom_call.1} parent=5 // pred_region
        // Predicated region
        $region17: #{tpu_custom_call.1} parent=15 // pred_check
          %p166 = pneg %p59
        $region18: #{tpu_custom_call.1} parent=15 // pred_check_branch
          %168 = sbr.rel (%p166) target = $region20
        $region19: #{tpu_custom_call.1} parent=15 // pred_region
          %s169 = sand.u32 %s49, 1
          %s170 = scalar_lea.sflag [#allocation4], %s169
          %s171 = sand.u32 %s49, 1
          %s172 = smul.addr %s171, 8
          %s173 = scalar_lea.vmem [#allocation3], %s172
          %s174 = smul.u32 2, %s25
          %s176 = ssub.s32 128, 128
          %177 = vsyncadd %s170, %s176
          %s178 = smul.addr %s23, 2
          %s179 = sadd.s32 %s174, %s178
          %s180 = smul.addr %s24, 2
          %s181 = sadd.s32 %s179, %s180
          %s182 = smul.addr %s181, 64
          %s183 = scalar_lea.hbm %s0, %s182
          %s184 = sshll.u32 %s173, 4
          %s185 = int_to_ptr.vmem [resolvable:$true] %s184
          %190 = dma.hbm_to_vmem [thread:$0]  %s183, 128, %s185, %s170, 64, 64, 4
        $region20: #{tpu_custom_call.1} parent=15 // pred_fallthru
          _
        // Predicated region
        $region21: #{tpu_custom_call.1} parent=15 // pred_check
          %p191 = pneg %p85
        $region22: #{tpu_custom_call.1} parent=15 // pred_check_branch
          %193 = sbr.rel (%p191) target = $region24
        $region23: #{tpu_custom_call.1} parent=15 // pred_region
          %s194 = sand.u32 %s75, 1
          %s195 = scalar_lea.sflag [#allocation7], %s194
          %s196 = sand.u32 %s75, 1
          %s197 = smul.addr %s196, 16
          %s198 = scalar_lea.vmem [#allocation6], %s197
          %s200 = ssub.s32 256, 256
          %201 = vsyncadd %s195, %s200
          %s202 = smul.addr %s24, 4
          %s203 = smul.addr %s202, 64
          %s204 = scalar_lea.hbm %s1, %s203
          %s205 = sshll.u32 %s198, 4
          %s206 = int_to_ptr.vmem [resolvable:$true] %s205
          %211 = dma.hbm_to_vmem [thread:$0]  %s204, 256, %s206, %s195, 64, 64, 4
        $region24: #{tpu_custom_call.1} parent=15 // pred_fallthru
          _
        // Predicated region
        $region25: #{tpu_custom_call.1} parent=15 // pred_check
          %p212 = pneg %p115
        $region26: #{tpu_custom_call.1} parent=15 // pred_check_branch
          %214 = sbr.rel (%p212) target = $region28
        $region27: #{tpu_custom_call.1} parent=15 // pred_region
          %p215 = scmp.lt.s32.totalorder %s24, 2
          %s216 = scalar_select %p215, %s24, 2
          %p217 = scmp.lt.s32.totalorder %s23, 0
          %s218 = scalar_select %p217, %s23, 0
          %p219 = scmp.lt.s32.totalorder %s25, 0
          %s220 = scalar_select %p219, %s25, 0
          %s221 = sadd.s32 %s220, %s218
          %s222 = sadd.s32 %s221, %s216
          %s223 = scalar_lea.vmem %s2, %s222
        $region28: #{tpu_custom_call.1} parent=15 // pred_fallthru
          _
      $region16: #{tpu_custom_call.1} parent=5 // pred_fallthru
        _
      %p224 = scmp.le.s32.totalorder 1, %s16
      %p225 = scmp.lt.s32.totalorder %s16, 4
      %p226 = pnand %p224, %p225
      %p227 = pneg %p226
      // Predicated region
      $region29: #{tpu_custom_call.1} parent=5 // pred_check
        _
      $region30: #{tpu_custom_call.1} parent=5 // pred_check_branch
        %229 = sbr.rel (%p226) target = $region32
      $region31: #{tpu_custom_call.1} parent=5 // pred_region
        %s230 = ssub.s32 %s16, 1
        %s231 = sand.u32 %s52, 1
        %s232 = scalar_lea.sflag [#allocation4], %s231
        %s233 = sand.u32 %s52, 1
        %s234 = smul.addr %s233, 8
        %s235 = scalar_lea.vmem [#allocation3], %s234
        // Predicated region
        $region33: #{tpu_custom_call.1} parent=31 // pred_check
          %p236 = pneg %p65
        $region34: #{tpu_custom_call.1} parent=31 // pred_check_branch
          %238 = sbr.rel (%p236) target = $region36
        $region35: #{tpu_custom_call.1} parent=31 // pred_region
          %239 = dma.done %s232, 128
        $region36: #{tpu_custom_call.1} parent=31 // pred_fallthru
          _
        %s240 = sand.u32 %s78, 1
        %s241 = scalar_lea.sflag [#allocation7], %s240
        %s242 = sand.u32 %s78, 1
        %s243 = smul.addr %s242, 16
        %s244 = scalar_lea.vmem [#allocation6], %s243
        // Predicated region
        $region37: #{tpu_custom_call.1} parent=31 // pred_check
          %p245 = pneg %p91
        $region38: #{tpu_custom_call.1} parent=31 // pred_check_branch
          %247 = sbr.rel (%p245) target = $region40
        $region39: #{tpu_custom_call.1} parent=31 // pred_region
          %248 = dma.done %s241, 256
        $region40: #{tpu_custom_call.1} parent=31 // pred_fallthru
          _
        %s249 = sand.u32 %s52, 1
        %s250 = scalar_lea.sflag [#allocation4], %s249
        %s251 = sand.u32 %s52, 1
        %s252 = smul.addr %s251, 8
        %s253 = scalar_lea.vmem [#allocation3], %s252
        %p254 = pneg %p65
        %p255 = pneg %p62
        %s256 = sand.u32 %s78, 1
        %s257 = scalar_lea.sflag [#allocation7], %s256
        %s258 = sand.u32 %s78, 1
        %s259 = smul.addr %s258, 16
        %s260 = scalar_lea.vmem [#allocation6], %s259
        %p261 = pneg %p91
        %p262 = pneg %p88
        %p263 = scmp.lt.s32.totalorder %s27, 2
        %s264 = scalar_select %p263, %s27, 2
        %p265 = scmp.lt.s32.totalorder %s26, 0
        %s266 = scalar_select %p265, %s26, 0
        %p267 = scmp.lt.s32.totalorder %s28, 0
        %s268 = scalar_select %p267, %s28, 0
        %s269 = sadd.s32 %s268, %s266
        %s270 = sadd.s32 %s269, %s264
        %s271 = scalar_lea.vmem %s2, %s270
        %p272 = pneg %p121
        %p273 = pneg %p118
        %p274 = pneg %p147
        %p275 = pneg %p144
        %s276 = smul.u32 2, %s28
        %p277 = scmp.lt.s32.totalorder %s27, 2
        %s278 = scalar_select %p277, %s27, 2
        %p279 = scmp.lt.s32.totalorder %s26, 0
        %s280 = scalar_select %p279, %s26, 0
        %p281 = scmp.lt.s32.totalorder %s28, 0
        %s282 = scalar_select %p281, %s28, 0
        %s283 = sadd.s32 %s282, %s280
        %s284 = sadd.s32 %s283, %s278
        %s285 = scalar_lea.vmem %s2, %s284
        %s286 = smul.u32 2, %s26
        %p288 = scmp.eq.s32.totalorder %s27, 0
        %p289 = scmp.eq.s32.totalorder %s28, 0
        %p290 = pnand %p288, %p289
        %p291 = pneg %p290
        // Predicated region
        $region41: #{tpu_custom_call.1} parent=31 // pred_check
          _
        $region42: #{tpu_custom_call.1} parent=31 // pred_check_branch
          %293 = sbr.rel (%p290) target = $region44
        $region43: #{tpu_custom_call.1} parent=31 // pred_region
          %294 = vst [vmem:[#allocation2] sm:$0xff] 0.0
          %295 = vst [vmem:[#allocation2 + $0x8] sm:$0xff] 0.0
        $region44: #{tpu_custom_call.1} parent=31 // pred_fallthru
          _
        %v296 = vld [vmem:[%s235] sm:$0xf]
        %v297 = vld [vmem:[%s235 + $0x4] sm:$0xf]
        %v298 = vld [vmem:[%s244] sm:$0xf]
        %v299 = vld [vmem:[%s244 + $0x4] sm:$0xf]
        %v300 = vld [vmem:[%s244 + $0x8] sm:$0xf]
        %v301 = vld [vmem:[%s244 + $0xc] sm:$0xf]
        %v304 = vunpack.c.l.b16 %v296
        %v305 = vunpack.c.l.b16 %v297
        %v306 = vpack.c.b16 %v305, %v304
        %v311 = vunpack.c.l.b16 %v298
        %v312 = vunpack.c.l.b16 %v299
        %v313 = vunpack.c.l.b16 %v300
        %v314 = vunpack.c.l.b16 %v301
        %v315 = vpack.c.b16 %v312, %v311
        %v316 = vpack.c.b16 %v314, %v313
        %vm319 = vcmask 261120
        %v321 = vsel %vm319, %v306, 0
        %323 = vmatprep.subr.bf16.mxu0 0
        %324 = vmatpush1.bf16.msra.mxu0 %v315
        %325 = vmatprep.subr.bf16.mxu0 0
        %326 = vmatpush1.bf16.msra.mxu0 %v316
        %327 = vmatprep.subr.bf16.mxu0 0
        %328 = vmatpush1.bf16.msra.mxu0 0
        %329 = vmatprep.subr.bf16.mxu0 0
        %330 = vmatpush1.bf16.msra.mxu0 0
        %331 = vmatprep.subr.bf16.mxu0 0
        %332 = vmatpush1.bf16.msra.mxu0 0
        %333 = vmatprep.subr.bf16.mxu0 0
        %334 = vmatpush1.bf16.msra.mxu0 0
        %335 = vmatprep.subr.bf16.mxu0 0
        %336 = vmatpush1.bf16.msra.mxu0 0
        %337 = vmatprep.subr.bf16.mxu0 0
        %338 = vmatpush1.bf16.msra.mxu0 0
        %339 = vmatprep.subr.bf16.mxu0 0
        %340 = vmatpush1.bf16.msra.mxu0 0
        %341 = vmatprep.subr.bf16.mxu0 0
        %342 = vmatpush1.bf16.msra.mxu0 0
        %343 = vmatprep.subr.bf16.mxu0 0
        %344 = vmatpush1.bf16.msra.mxu0 0
        %345 = vmatprep.subr.bf16.mxu0 0
        %346 = vmatpush1.bf16.msra.mxu0 0
        %347 = vmatprep.subr.bf16.mxu0 0
        %348 = vmatpush1.bf16.msra.mxu0 0
        %349 = vmatprep.subr.bf16.mxu0 0
        %350 = vmatpush1.bf16.msra.mxu0 0
        %351 = vmatprep.subr.bf16.mxu0 0
        %352 = vmatpush1.bf16.msra.mxu0 0
        %353 = vmatprep.subr.bf16.mxu0 0
        %354 = vmatpush1.bf16.msra.mxu0 0
        %355 = vmatprep.mubr.bf16.mxu0 0
        %356 = vmatmul.mubr.bf16.gmra.mrb[0].mxu0 %v321
        %v357 = vpop.f32.mrb[0].mxu0
        %v358 = vadd.f32 0.0, %v357
        %v359 = vpop.f32.mrb[0].mxu0
        %v360 = vpop.f32.mrb[0].mxu0
        %v361 = vadd.f32 0.0, %v360
        %v362 = vpop.f32.mrb[0].mxu0
        %363 = vdwg.mxu0
        %v364 = vmax.f32 %v358, 0.0
        %v365 = vmax.f32 %v361, 0.0
        %v366 = vlaneseq
        %v367 = vshrl.u32 %v366, 7
        %v368 = vadd.s32 %v367, 8
        %s369 = smul.u32 %s26, 16
        %v370 = vstv %s369
        %v371 = vadd.s32 %v367, %v370
        %v372 = vadd.s32 %v368, %v370
        %v373 = vld [vmem:[%s285] sm:$0x1]
        %v374 = vlaneseq
        %v375 = vshrl.u32 %v374, 7
        %v376 = vsub.s32 0, %v375
        %v377 = vrot.slane %v373, %v376
        %vm378 = vcmp.eq.s32.totalorder %v371, %v377
        %vm379 = vcmp.eq.s32.totalorder %v372, %v377
        %v380 = vsel %vm378, 1, 0
        %v381 = vsel %vm379, 1, 0
        %v382 = vcvt.s32.f32 %v380
        %v383 = vcvt.s32.f32 %v381
        %v384 = vpack.c.bf16 %v383, %v382
        %v385 = vld [vmem:[#allocation2] sm:$0xff]
        %v386 = vld [vmem:[#allocation2 + $0x8] sm:$0xff]
        %v387 = vpack.c.bf16 %v365, %v364
        %vm388 = vcmask 130048
        %v390 = vsel %vm388, %v384, 0
        %392 = vmatprep.subr.bf16.mxu0 0
        %393 = vmatpush1.bf16.msra.mxu0 %v387
        %394 = vmatprep.subr.bf16.mxu0 0
        %395 = vmatpush1.bf16.msra.mxu0 0
        %396 = vmatprep.subr.bf16.mxu0 0
        %397 = vmatpush1.bf16.msra.mxu0 0
        %398 = vmatprep.subr.bf16.mxu0 0
        %399 = vmatpush1.bf16.msra.mxu0 0
        %400 = vmatprep.subr.bf16.mxu0 0
        %401 = vmatpush1.bf16.msra.mxu0 0
        %402 = vmatprep.subr.bf16.mxu0 0
        %403 = vmatpush1.bf16.msra.mxu0 0
        %404 = vmatprep.subr.bf16.mxu0 0
        %405 = vmatpush1.bf16.msra.mxu0 0
        %406 = vmatprep.subr.bf16.mxu0 0
        %407 = vmatpush1.bf16.msra.mxu0 0
        %408 = vmatprep.subr.bf16.mxu0 0
        %409 = vmatpush1.bf16.msra.mxu0 0
        %410 = vmatprep.subr.bf16.mxu0 0
        %411 = vmatpush1.bf16.msra.mxu0 0
        %412 = vmatprep.subr.bf16.mxu0 0
        %413 = vmatpush1.bf16.msra.mxu0 0
        %414 = vmatprep.subr.bf16.mxu0 0
        %415 = vmatpush1.bf16.msra.mxu0 0
        %416 = vmatprep.subr.bf16.mxu0 0
        %417 = vmatpush1.bf16.msra.mxu0 0
        %418 = vmatprep.subr.bf16.mxu0 0
        %419 = vmatpush1.bf16.msra.mxu0 0
        %420 = vmatprep.subr.bf16.mxu0 0
        %421 = vmatpush1.bf16.msra.mxu0 0
        %422 = vmatprep.subr.bf16.mxu0 0
        %423 = vmatpush1.bf16.msra.mxu0 0
        %424 = vmatprep.mubr.bf16.mxu0 0
        %425 = vmatmul.mubr.bf16.gmra.mrb[0].mxu0 %v390
        %v426 = vpop.f32.mrb[0].mxu0
        %v427 = vadd.f32 0.0, %v426
        %v428 = vpop.f32.mrb[0].mxu0
        %v429 = vpop.f32.mrb[0].mxu0
        %v430 = vadd.f32 0.0, %v429
        %v431 = vpop.f32.mrb[0].mxu0
        %432 = vdwg.mxu0
        %v433 = vadd.f32 %v385, %v427
        %v434 = vadd.f32 %v386, %v430
        %435 = vst [vmem:[#allocation2] sm:$0xff] %v433
        %436 = vst [vmem:[#allocation2 + $0x8] sm:$0xff] %v434
        %p437 = scmp.eq.s32.totalorder %s27, 2
        %p438 = pnand %p437, %p289
        %p439 = pneg %p438
        // Predicated region
        $region45: #{tpu_custom_call.1} parent=31 // pred_check
          _
        $region46: #{tpu_custom_call.1} parent=31 // pred_check_branch
          %441 = sbr.rel (%p438) target = $region48
        $region47: #{tpu_custom_call.1} parent=31 // pred_region
          %v442 = vld [vmem:[#allocation2] sm:$0xff]
          %v443 = vld [vmem:[#allocation2 + $0x8] sm:$0xff]
          %444 = vst [vmem:[#allocation8] sm:$0xff] %v442
          %445 = vst [vmem:[#allocation8 + $0x8] sm:$0xff] %v443
        $region48: #{tpu_custom_call.1} parent=31 // pred_fallthru
          _
        // Predicated region
        $region49: #{tpu_custom_call.1} parent=31 // pred_check
          %p446 = pneg %p144
        $region50: #{tpu_custom_call.1} parent=31 // pred_check_branch
          %448 = sbr.rel (%p446) target = $region52
        $region51: #{tpu_custom_call.1} parent=31 // pred_region
          %s449 = smul.u32 2, %s26
          %s451 = ssub.s32 256, 256
          %452 = vsyncadd [#allocation5], %s451
          %s453 = smul.addr %s449, 128
          %s454 = scalar_lea.hbm %s3, %s453
          %s455 = sshll.u32 [#allocation8], 4
          %s456 = int_to_ptr.vmem [resolvable:$true] %s455
          %461 = dma.vmem_to_hbm [thread:$0]  %s456, 256, %s454, [#allocation5], 128, 128, 8
        $region52: #{tpu_custom_call.1} parent=31 // pred_fallthru
          _
        // Predicated region
        $region53: #{tpu_custom_call.1} parent=31 // pred_check
          %p462 = pneg %p144
        $region54: #{tpu_custom_call.1} parent=31 // pred_check_branch
          %464 = sbr.rel (%p462) target = $region56
        $region55: #{tpu_custom_call.1} parent=31 // pred_region
          %465 = dma.done [#allocation5], 256
        $region56: #{tpu_custom_call.1} parent=31 // pred_fallthru
          _
      $region32: #{tpu_custom_call.1} parent=5 // pred_fallthru
        _
      %p466 = scmp.le.s32.totalorder 2, %s16
      // Predicated region
      $region57: #{tpu_custom_call.1} parent=5 // pred_check
        %p467 = pneg %p466
      $region58: #{tpu_custom_call.1} parent=5 // pred_check_branch
        %469 = sbr.rel (%p467) target = $region60
      $region59: #{tpu_custom_call.1} parent=5 // pred_region
        %s470 = ssub.s32 %s16, 2
      $region60: #{tpu_custom_call.1} parent=5 // pred_fallthru
        _
    $region6: #{tpu_custom_call.1} parent=1 // loop_footer
      %s20 = sadd.s32 1, %s16
    $region7: #{tpu_custom_call.1} parent=1 // loop_footer_branch
      %15 = sbr.rel target = $region3
    $region8: #{tpu_custom_call.1} parent=1 // loop_exit
      _
    %471 = vsyncpa [#allocation4], 1
    %s472 = scalar_lea.sflag [#allocation4], 1
    %473 = vsyncpa %s472, 1
    %474 = vsyncpa [#allocation7], 1
    %s475 = scalar_lea.sflag [#allocation7], 1
    %476 = vsyncpa %s475, 1
    %477 = vsyncpa [#allocation5], 1
    %s478 = scalar_lea.sflag [#allocation5], 1
    %479 = vsyncpa %s478, 1

</llo_original>
